<compile_context>
chip_gen: v7x
topology: tpu7x:2x2x1
jax: 0.10.0
libtpu: 0.0.40
codegen_flags: <defaults>
</compile_context>

<pallas_src>
import math

import numpy as np
import jax
import jax.numpy as jnp
from jax.experimental import pallas as pl
from jax.experimental.pallas import tpu as pltpu


def _round_up(a, b):
    return ((a + b - 1) // b) * b


def _cdiv(a, b):
    return (a + b - 1) // b


# --------------------------------- kernel ------------------------------------


def down_kernel(x_ref, wt_ref, brow_ref, o_ref):
    # x_ref: (tm, tk) f32, wt_ref: (tk, tn) bf16, brow_ref: (1, tn) f32,
    # o_ref: (tm, tn) f32 (resident across the K axis -> direct accumulation).
    k = pl.program_id(2)
    part = jnp.dot(
        x_ref[...].astype(jnp.bfloat16),       # bf16 MXU operand, f32 accumulate
        wt_ref[...],
        preferred_element_type=jnp.float32,
    )

    @pl.when(k == 0)
    def _():
        # bias folded once: y = x @ W.T - (bias @ W.T)
        o_ref[...] = part - brow_ref[...]

    @pl.when(k > 0)
    def _():
        o_ref[...] += part


# ------------------------- one-time parameter prep ---------------------------


def prepare_down_params(weight, bias):
    """Hoisted per-call work: transpose, pad, bias@W.T row, bf16 cast.

    Mirrors `_fix()` being a no-op for an orthonormal weight (handled at init).
    """
    N, K = weight.shape
    assert bias.shape == (K,)

    wt = jnp.transpose(weight).astype(jnp.float32)          # (K, N)
    Np = _round_up(N, 128)                                   # lane-dense output
    if Np != N:
        wt = jnp.pad(wt, ((0, 0), (0, Np - N)))              # zero cols -> exact

    # bias correction row, kept in f32 for accuracy
    brow = jnp.dot(bias.reshape(1, K).astype(jnp.float32), wt)   # (1, Np)

    # K-axis tiling decided at setup so the zero-padding of W.T is one-time.
    if K <= 2048:
        Kp, tk0 = K, K                                       # single K step
    else:
        tk0 = 512
        Kp = _round_up(K, tk0)
        if Kp != K:
            wt = jnp.pad(wt, ((0, Kp - K), (0, 0)))          # zero rows -> exact

    wt = wt.astype(jnp.bfloat16)                             # MXU operand dtype

    return dict(wt=wt, brow=brow, N=N, K=K, Kp=Kp, Np=Np, tk0=tk0)


# --------------------------------- forward -----------------------------------


def down_forward(x, params, *, tm_max=512):
    """y = (x - bias) @ weight.T  ==  x @ weight.T - bias @ weight.T."""
    M, K = x.shape
    wt, brow = params["wt"], params["brow"]
    N, Kp, Np, tk0 = params["N"], params["Kp"], params["Np"], params["tk0"]
    assert K == params["K"]

    # Only needed for large, non-128-divisible K (zero columns -> exact).
    xk = x if Kp == K else jnp.pad(x, ((0, 0), (0, Kp - K)))
    x_item = jnp.dtype(xk.dtype).itemsize

    # ---- chip-aware VMEM policy ----
    try:
        vmem_cap = int(pltpu.get_tpu_info().vmem_capacity_bytes)
    except Exception:  # pragma: no cover - conservative fallback
        vmem_cap = 64 << 20
    budget = int(vmem_cap * 0.70)

    # ---- tile selection ----
    tm = min(int(tm_max), _round_up(M, 8))
    tn = next(c for c in (512, 256, 128) if c <= Np and Np % c == 0)
    tk = tk0

    def vmem_bytes(tm_, tn_, tk_):
        return (2 * tm_ * tk_ * x_item      # x tiles (double buffered)
                + 2 * tk_ * tn_ * 2         # bf16 W.T tiles (double buffered)
                + 2 * tn_ * 4               # bias row
                + 2 * tm_ * tn_ * 4)        # resident f32 output block

    def can_halve_tk(tk_):
        h = tk_ // 2
        return h >= 128 and h % 128 == 0 and Kp % h == 0

    # shrink tk first, then tn, then tm (never crush tm while tk can shrink)
    while vmem_bytes(tm, tn, tk) > budget:
        if can_halve_tk(tk):
            tk //= 2
        elif tn > 128:
            tn //= 2
        elif tm > 8:
            tm = max(8, _round_up(tm // 2, 8))
        else:
            break

    # Make sure the parallel grid product is >= 2 so both v7x TCs get work.
    if _cdiv(M, tm) * (Np // tn) == 1:
        if tn > 128:
            tn //= 2
        elif M >= 16:
            tm = _round_up(_cdiv(M, 2), 8)

    gm, gn, gk = _cdiv(M, tm), Np // tn, Kp // tk
    grid = (gm, gn, gk)

    need = vmem_bytes(tm, tn, tk)
    vmem_limit = int(min(vmem_cap - (8 << 20),
                         max(int(need * 1.25), 32 << 20)))

    cost = pl.CostEstimate(
        flops=2 * M * Kp * Np,
        transcendentals=0,
        bytes_accessed=int(x_item * M * Kp * gn      # x re-read per N tile
                           + 2 * Kp * Np * gm        # bf16 W.T re-read per M tile
                           + 4 * Np * gm * gn        # bias row
                           + 4 * M * Np),            # output written once
    )

    out = pl.pallas_call(
        down_kernel,
        out_shape=jax.ShapeDtypeStruct((M, Np), jnp.float32),
        grid_spec=pltpu.PrefetchScalarGridSpec(
            num_scalar_prefetch=0,
            grid=grid,
            in_specs=[
                pl.BlockSpec((tm, tk), lambda i, j, k: (i, k)),    # x tile
                pl.BlockSpec((tk, tn), lambda i, j, k: (k, j)),    # W.T tile (bf16)
                pl.BlockSpec((1, tn), lambda i, j, k: (0, j)),     # bias @ W.T row
            ],
            out_specs=pl.BlockSpec((tm, tn), lambda i, j, k: (i, j)),
        ),
        compiler_params=pltpu.CompilerParams(
            dimension_semantics=("parallel", "parallel", "arbitrary"),
            vmem_limit_bytes=vmem_limit,
        ),
        cost_estimate=cost,
    )(xk, wt, brow)

    return out if Np == N else out[:, :N]


# ---------------- parameter init (mirrors down.__init__ / reset_parameters) ---


def init_down_params(key, in_features, out_features):
    kb, ka = jax.random.split(key)
    stdv = 1.0 / math.sqrt(in_features)
    bias = jax.random.uniform(
        kb, (in_features,), minval=-stdv, maxval=stdv, dtype=jnp.float32
    )
    # weight = V^T[:out_features, :] of a random (out, in) matrix -> orthonormal rows
    a = np.asarray(jax.random.normal(ka, (out_features, in_features), jnp.float32))
    _, _, vt = np.linalg.svd(a, full_matrices=True)
    weight = np.array(vt[:out_features, :], dtype=np.float32)

    # _fix(): reOrth until badness < 1e-4 (host-side glue; no-op for SVD init)
    # TODO(synk): the backward gradient hook (bH) has no forward-pass equivalent.
    def badness(w):
        y = w @ w.T - np.eye(out_features, dtype=np.float32)
        return float(np.sum(y * y))

    while badness(weight) > 1e-4:
        collapsed = (weight @ weight.T) @ weight        # _collapse(W, bias=False)
        weight = weight + (weight - collapsed) / out_features
        norms = np.sqrt(np.sum(weight * weight, axis=1, keepdims=True))
        weight = weight / norms

    return jnp.asarray(weight), bias


# ------------------------------------------------------------------------------


if __name__ == "__main__":
    key = jax.random.PRNGKey(0)
    k_param, k_x = jax.random.split(key)

    in_features = 32
    out_features = 16
    batch = 64  # rows of x

    weight, bias = init_down_params(k_param, in_features, out_features)
    params = prepare_down_params(weight, bias)          # one-time prep (hoisted)

    x = jax.random.normal(k_x, (batch, in_features), jnp.float32)

    y = down_forward(x, params)
    y = jax.block_until_ready(y)

    # 1) kernel-numerics check: same bf16-operand / f32-accumulate math in plain JAX
    y_ref_bf16 = (
        jnp.dot(x.astype(jnp.bfloat16), weight.T.astype(jnp.bfloat16),
                preferred_element_type=jnp.float32)
        - jnp.dot(bias.reshape(1, -1), weight.T)
    )
    np.testing.assert_allclose(np.asarray(y), np.asarray(y_ref_bf16),
                               rtol=1e-3, atol=1e-3)

    # 2) module-semantics check: exact f32 reference (loose tol for bf16 operands)
    y_ref = (x - bias[None, :]) @ weight.T
    np.testing.assert_allclose(np.asarray(y), np.asarray(y_ref),
                               rtol=5e-2, atol=5e-2)

    print("KERNEL_OK")
</pallas_src>

<mosaic_0001>
module attributes {stable_mosaic.version = 11 : i64} {
  func.func @down_kernel(%arg0: i32, %arg1: i32, %arg2: i32, %arg3: memref<32x32xf32, #tpu.memory_space<vmem>>, %arg4: memref<32x128xbf16, #tpu.memory_space<vmem>>, %arg5: memref<1x128xf32, #tpu.memory_space<vmem>>, %arg6: memref<32x128xf32, #tpu.memory_space<vmem>>) attributes {dimension_semantics = [#tpu.dimension_semantics<parallel>, #tpu.dimension_semantics<parallel>, #tpu.dimension_semantics<arbitrary>], iteration_bounds = array<i64: 2, 1, 1>, scalar_prefetch = 0 : i64, scratch_operands = 0 : i64, tpu.core_type = #tpu.core_type<tc>, window_params = [{transform_indices = @transform_0, window_bounds = array<i64: 32, 32>}, {transform_indices = @transform_1, window_bounds = array<i64: 32, 128>}, {transform_indices = @transform_2, window_bounds = array<i64: 1, 128>}, {transform_indices = @transform_3, window_bounds = array<i64: 32, 128>}]} {
    %c0 = arith.constant 0 : index
    %c0_0 = arith.constant 0 : index
    %0 = vector.load %arg3[%c0, %c0_0] : memref<32x32xf32, #tpu.memory_space<vmem>>, vector<32x32xf32>
    %1 = arith.truncf %0 : vector<32x32xf32> to vector<32x32xbf16>
    %c0_1 = arith.constant 0 : index
    %c0_2 = arith.constant 0 : index
    %2 = vector.load %arg4[%c0_1, %c0_2] : memref<32x128xbf16, #tpu.memory_space<vmem>>, vector<32x128xbf16>
    %cst = arith.constant dense<0.000000e+00> : vector<32x128xf32>
    %3 = tpu.matmul %1, %2, %cst {dimension_numbers = #tpu.dot_dimension_numbers<[1], [0], [0], [1], [0, 0, 1, 1], [], []>} : vector<32x32xbf16>, vector<32x128xbf16>, vector<32x128xf32> -> vector<32x128xf32>
    %c0_i32 = arith.constant 0 : i32
    %4 = arith.cmpi eq, %arg2, %c0_i32 : i32
    %5 = arith.extui %4 : i1 to i32
    %c0_i32_3 = arith.constant 0 : i32
    %6 = arith.cmpi ne, %5, %c0_i32_3 : i32
    scf.if %6 {
      %c0_6 = arith.constant 0 : index
      %c0_7 = arith.constant 0 : index
      %10 = vector.load %arg5[%c0_6, %c0_7] : memref<1x128xf32, #tpu.memory_space<vmem>>, vector<1x128xf32>
      %11 = vector.broadcast %10 : vector<1x128xf32> to vector<32x128xf32>
      %12 = arith.subf %3, %11 : vector<32x128xf32>
      %c0_8 = arith.constant 0 : index
      %c0_9 = arith.constant 0 : index
      %13 = vector.load %arg6[%c0_8, %c0_9] : memref<32x128xf32, #tpu.memory_space<vmem>>, vector<32x128xf32>
      tpu.vector_store %arg6[%c0_8, %c0_9], %12 {strides = array<i32>} : memref<32x128xf32, #tpu.memory_space<vmem>>, vector<32x128xf32>,
    } else {
    }
    %c0_i32_4 = arith.constant 0 : i32
    %7 = arith.cmpi sgt, %arg2, %c0_i32_4 : i32
    %8 = arith.extui %7 : i1 to i32
    %c0_i32_5 = arith.constant 0 : i32
    %9 = arith.cmpi ne, %8, %c0_i32_5 : i32
    scf.if %9 {
      %c0_6 = arith.constant 0 : index
      %c0_7 = arith.constant 0 : index
      %10 = vector.load %arg6[%c0_6, %c0_7] : memref<32x128xf32, #tpu.memory_space<vmem>>, vector<32x128xf32>
      %11 = arith.addf %10, %3 : vector<32x128xf32>
      %c0_8 = arith.constant 0 : index
      %c0_9 = arith.constant 0 : index
      %12 = vector.load %arg6[%c0_8, %c0_9] : memref<32x128xf32, #tpu.memory_space<vmem>>, vector<32x128xf32>
      tpu.vector_store %arg6[%c0_8, %c0_9], %11 {strides = array<i32>} : memref<32x128xf32, #tpu.memory_space<vmem>>, vector<32x128xf32>,
    } else {
    }
    return
  }
  func.func @transform_0(%arg0: i32, %arg1: i32, %arg2: i32) -> (i32, i32) {
    %c0_i32 = arith.constant 0 : i32
    return %arg0, %arg2 : i32, i32
  }
  func.func @transform_1(%arg0: i32, %arg1: i32, %arg2: i32) -> (i32, i32) {
    %c0_i32 = arith.constant 0 : i32
    return %arg2, %arg1 : i32, i32
  }
  func.func @transform_2(%arg0: i32, %arg1: i32, %arg2: i32) -> (i32, i32) {
    %c0_i32 = arith.constant 0 : i32
    %c0_i32_0 = arith.constant 0 : i32
    return %c0_i32, %arg1 : i32, i32
  }
  func.func @transform_3(%arg0: i32, %arg1: i32, %arg2: i32) -> (i32, i32) {
    %c0_i32 = arith.constant 0 : i32
    return %arg0, %arg1 : i32, i32
  }
}

</mosaic_0001>

<llo_original>
// kernel: tpu_custom_call.1
$region0: #{tpu_custom_call.1}
  #allocation0 [shape = 'u32[]', space=smem, size = 0x4, offset = 0x4, fixed_abs, tag = 'smem constant byte address 0x4 - core index']
  #allocation1 [shape = 'u32[144,128]{1,0:T(1,128)}', space=vmem, size = 0x12000, scoped, tag = 'internal scratch']
  %s0 = inlined_call_operand.vmem [shape: f32[64,32], index: 0, kind: input, shape index: {}]
  %s1 = inlined_call_operand.vmem [shape: bf16[32,128], index: 1, kind: input, shape index: {}]
  %s2 = inlined_call_operand.vmem [shape: f32[1,128], index: 2, kind: input, shape index: {}]
  %s3 = inlined_call_operand.hbm [shape: f32[64,128], index: 3, kind: output, shape index: {}]
  %s4 = sld [smem:[#allocation0]]
  $region53: #{tpu_custom_call.1} parent=0
    _
  %s6 = ssub.s32 1, %s4
  %s7 = scalar_select 0, %s6, %s4
  $region1: #{tpu_custom_call.1} parent=0
    #allocation2 [shape = 'u8[32768]{0}', space=vmem, size = 0x8000, scoped, tag = 'output window, operand 0']
    #allocation3 [shape = 's32[2]{0}', space=sflag, size = 0x8, scoped, tag = 'scoped memory for tpu_custom_call.1']
    %8 = vsyncpa [#allocation3], 0
    %s9 = scalar_lea.sflag [#allocation3], 1
    %10 = vsyncpa %s9, 0
    loop: start=0, step=1, limit=4
    $region2: #{tpu_custom_call.1} parent=1 // loop_pre_header
      _
    $region3: #{tpu_custom_call.1} parent=1 // loop_header
      %s12 = sphi 0, %s16
      %p13 = scmp.ge.s32.totalorder %s12, 4
      %s19 = sphi 0, %s38
      %s20 = sphi 0, %s34
      %s21 = sphi 0, %s30
      %s22 = sphi 0, %s19
      %s23 = sphi 0, %s20
      %s24 = sphi 0, %s21
      %s25 = sphi 0, %s22
      %s26 = sphi 0, %s23
      %s27 = sphi 0, %s24
      %s43 = sphi 0, %s45
      %s46 = sphi 0, %s43
      %s47 = sphi 0, %s46
      %s63 = sphi 0, %s47
      %s71 = sphi 0, %s73
      %s74 = sphi 0, %s71
      %s75 = sphi 0, %s74
      %s91 = sphi 0, %s75
      %s97 = sphi 0, %s99
      %s100 = sphi 0, %s97
      %s101 = sphi 0, %s100
      %s117 = sphi 0, %s101
      %s125 = sphi 0, %s127
      %s128 = sphi 0, %s125
      %s129 = sphi 0, %s128
      %s145 = sphi 0, %s129
    $region4: #{tpu_custom_call.1} parent=1 // loop_header_branch
      %15 = sbr.rel (%p13) target = $region8
    $region5: #{tpu_custom_call.1} parent=1 // loop_body
      %s17 = ssub.s32 %s12, 1
      %s18 = ssub.s32 %s12, 2
      %s28 = sadd.s32 1, %s21
      %p29 = scmp.ge.s32.totalorder %s28, 1
      %s30 = scalar_select %p29, 0, %s28
      %s31 = sadd.s32 1, %s20
      %s32 = scalar_select %p29, %s31, %s20
      %p33 = scmp.ge.s32.totalorder %s32, 1
      %s34 = scalar_select %p33, 0, %s32
      %s35 = sadd.s32 1, %s19
      %s36 = scalar_select %p33, %s35, %s19
      %p37 = scmp.ge.s32.totalorder %s36, 2
      %s38 = scalar_select %p37, 0, %s36
      %s39 = ssub.s32 %s19, %s38
      %s40 = ssub.s32 %s21, %s30
      %s41 = sor.u32 %s39, %s40
      %p42 = scmp.eq.s32.totalorder %s41, 0
      %s44 = sadd.s32 %s43, 1
      %s45 = scalar_select %p42, %s43, %s44
      %p48 = pneg %p42
      %p49 = scmp.eq.s32.totalorder %s12, 1
      %p50 = por %p48, %p49
      %p51 = scmp.ne.s32.totalorder %s43, %s46
      %p52 = scmp.eq.s32.totalorder %s12, 0
      %p53 = por %p51, %p52
      %p54 = scmp.ne.s32.totalorder %s43, %s46
      %p55 = scmp.eq.s32.totalorder %s17, 1
      %p56 = por %p54, %p55
      %p57 = scmp.ne.s32.totalorder %s46, %s47
      %p58 = scmp.eq.s32.totalorder %s17, 0
      %p59 = por %p57, %p58
      %p60 = scmp.ne.s32.totalorder %s46, %s47
      %p61 = scmp.eq.s32.totalorder %s18, 1
      %p62 = por %p60, %p61
      %p64 = scmp.ne.s32.totalorder %s47, %s63
      %p65 = scmp.eq.s32.totalorder %s18, 0
      %p66 = por %p64, %p65
      %s67 = ssub.s32 %s21, %s30
      %s68 = ssub.s32 %s20, %s34
      %s69 = sor.u32 %s67, %s68
      %p70 = scmp.eq.s32.totalorder %s69, 0
      %s72 = sadd.s32 %s71, 1
      %s73 = scalar_select %p70, %s71, %s72
      %p76 = pneg %p70
      %p77 = scmp.eq.s32.totalorder %s12, 1
      %p78 = por %p76, %p77
      %p79 = scmp.ne.s32.totalorder %s71, %s74
      %p80 = scmp.eq.s32.totalorder %s12, 0
      %p81 = por %p79, %p80
      %p82 = scmp.ne.s32.totalorder %s71, %s74
      %p83 = scmp.eq.s32.totalorder %s17, 1
      %p84 = por %p82, %p83
      %p85 = scmp.ne.s32.totalorder %s74, %s75
      %p86 = scmp.eq.s32.totalorder %s17, 0
      %p87 = por %p85, %p86
      %p88 = scmp.ne.s32.totalorder %s74, %s75
      %p89 = scmp.eq.s32.totalorder %s18, 1
      %p90 = por %p88, %p89
      %p92 = scmp.ne.s32.totalorder %s75, %s91
      %p93 = scmp.eq.s32.totalorder %s18, 0
      %p94 = por %p92, %p93
      %s95 = ssub.s32 %s20, %s34
      %p96 = scmp.eq.s32.totalorder %s95, 0
      %s98 = sadd.s32 %s97, 1
      %s99 = scalar_select %p96, %s97, %s98
      %p102 = pneg %p96
      %p103 = scmp.eq.s32.totalorder %s12, 1
      %p104 = por %p102, %p103
      %p105 = scmp.ne.s32.totalorder %s97, %s100
      %p106 = scmp.eq.s32.totalorder %s12, 0
      %p107 = por %p105, %p106
      %p108 = scmp.ne.s32.totalorder %s97, %s100
      %p109 = scmp.eq.s32.totalorder %s17, 1
      %p110 = por %p108, %p109
      %p111 = scmp.ne.s32.totalorder %s100, %s101
      %p112 = scmp.eq.s32.totalorder %s17, 0
      %p113 = por %p111, %p112
      %p114 = scmp.ne.s32.totalorder %s100, %s101
      %p115 = scmp.eq.s32.totalorder %s18, 1
      %p116 = por %p114, %p115
      %p118 = scmp.ne.s32.totalorder %s101, %s117
      %p119 = scmp.eq.s32.totalorder %s18, 0
      %p120 = por %p118, %p119
      %s121 = ssub.s32 %s19, %s38
      %s122 = ssub.s32 %s20, %s34
      %s123 = sor.u32 %s121, %s122
      %p124 = scmp.eq.s32.totalorder %s123, 0
      %s126 = sadd.s32 %s125, 1
      %s127 = scalar_select %p124, %s125, %s126
      %p130 = pneg %p124
      %p131 = scmp.eq.s32.totalorder %s12, 1
      %p132 = por %p130, %p131
      %p133 = scmp.ne.s32.totalorder %s125, %s128
      %p134 = scmp.eq.s32.totalorder %s12, 0
      %p135 = por %p133, %p134
      %p136 = scmp.ne.s32.totalorder %s125, %s128
      %p137 = scmp.eq.s32.totalorder %s17, 1
      %p138 = por %p136, %p137
      %p139 = scmp.ne.s32.totalorder %s128, %s129
      %p140 = scmp.eq.s32.totalorder %s17, 0
      %p141 = por %p139, %p140
      %p142 = scmp.ne.s32.totalorder %s128, %s129
      %p143 = scmp.eq.s32.totalorder %s18, 1
      %p144 = por %p142, %p143
      %p146 = scmp.ne.s32.totalorder %s129, %s145
      %p147 = scmp.eq.s32.totalorder %s18, 0
      %p148 = por %p146, %p147
      %p149 = scmp.le.s32.totalorder 1, %s12
      %p150 = scmp.lt.s32.totalorder %s12, 3
      %p151 = pnand %p149, %p150
      %p152 = pneg %p151
      // Predicated region
      $region9: #{tpu_custom_call.1} parent=5 // pred_check
        _
      $region10: #{tpu_custom_call.1} parent=5 // pred_check_branch
        %154 = sbr.rel (%p151) target = $region12
      $region11: #{tpu_custom_call.1} parent=5 // pred_region
        %s155 = ssub.s32 %s12, 1
        // Predicated region
        $region13: #{tpu_custom_call.1} parent=11 // pred_check
          %p156 = pneg %p87
        $region14: #{tpu_custom_call.1} parent=11 // pred_check_branch
          %158 = sbr.rel (%p156) target = $region16
        $region15: #{tpu_custom_call.1} parent=11 // pred_region
          %s159 = smul.u32 4, %s24
          %p160 = scmp.lt.s32.totalorder %s159, 3
          %s161 = scalar_select %p160, %s159, 3
          %p162 = scmp.lt.s32.totalorder %s23, 0
          %s163 = scalar_select %p162, %s23, 0
          %s164 = sadd.s32 %s163, %s161
          %s165 = smul.addr %s164, 4
          %s166 = scalar_lea.vmem %s1, %s165
          %s167 = smul.u32 4, %s24
        $region16: #{tpu_custom_call.1} parent=11 // pred_fallthru
          _
        // Predicated region
        $region17: #{tpu_custom_call.1} parent=11 // pred_check
          %p168 = pneg %p113
        $region18: #{tpu_custom_call.1} parent=11 // pred_check_branch
          %170 = sbr.rel (%p168) target = $region20
        $region19: #{tpu_custom_call.1} parent=11 // pred_region
          %p171 = scmp.lt.s32.totalorder %s23, 0
          %s172 = scalar_select %p171, %s23, 0
          %s173 = scalar_lea.vmem %s2, %s172
        $region20: #{tpu_custom_call.1} parent=11 // pred_fallthru
          _
      $region12: #{tpu_custom_call.1} parent=5 // pred_fallthru
        _
      %p174 = scmp.lt.s32.totalorder %s12, 2
      // Predicated region
      $region21: #{tpu_custom_call.1} parent=5 // pred_check
        %p175 = pneg %p174
      $region22: #{tpu_custom_call.1} parent=5 // pred_check_branch
        %177 = sbr.rel (%p175) target = $region24
      $region23: #{tpu_custom_call.1} parent=5 // pred_region
        // Predicated region
        $region25: #{tpu_custom_call.1} parent=23 // pred_check
          %p178 = pneg %p53
        $region26: #{tpu_custom_call.1} parent=23 // pred_check_branch
          %180 = sbr.rel (%p178) target = $region28
        $region27: #{tpu_custom_call.1} parent=23 // pred_region
          %s181 = smul.u32 4, %s19
          %p182 = scmp.lt.s32.totalorder %s181, 7
          %s183 = scalar_select %p182, %s181, 7
          %p184 = scmp.lt.s32.totalorder %s21, 0
          %s185 = scalar_select %p184, %s21, 0
          %s186 = sadd.s32 %s185, %s183
          %s187 = smul.addr %s186, 8
          %s188 = scalar_lea.vmem %s0, %s187
          %s189 = smul.u32 4, %s19
        $region28: #{tpu_custom_call.1} parent=23 // pred_fallthru
          _
      $region24: #{tpu_custom_call.1} parent=5 // pred_fallthru
        _
      %p190 = scmp.le.s32.totalorder 1, %s12
      %p191 = scmp.lt.s32.totalorder %s12, 3
      %p192 = pnand %p190, %p191
      %p193 = pneg %p192
      // Predicated region
      $region29: #{tpu_custom_call.1} parent=5 // pred_check
        _
      $region30: #{tpu_custom_call.1} parent=5 // pred_check_branch
        %195 = sbr.rel (%p192) target = $region32
      $region31: #{tpu_custom_call.1} parent=5 // pred_region
        %s196 = ssub.s32 %s12, 1
        %s197 = smul.u32 4, %s22
        %p198 = scmp.lt.s32.totalorder %s197, 7
        %s199 = scalar_select %p198, %s197, 7
        %p200 = scmp.lt.s32.totalorder %s24, 0
        %s201 = scalar_select %p200, %s24, 0
        %s202 = sadd.s32 %s201, %s199
        %s203 = smul.addr %s202, 8
        %s204 = scalar_lea.vmem %s0, %s203
        %p205 = pneg %p59
        %p206 = pneg %p56
        %s207 = smul.u32 4, %s24
        %p208 = scmp.lt.s32.totalorder %s207, 3
        %s209 = scalar_select %p208, %s207, 3
        %p210 = scmp.lt.s32.totalorder %s23, 0
        %s211 = scalar_select %p210, %s23, 0
        %s212 = sadd.s32 %s211, %s209
        %s213 = smul.addr %s212, 4
        %s214 = scalar_lea.vmem %s1, %s213
        %p215 = pneg %p87
        %p216 = pneg %p84
        %p217 = scmp.lt.s32.totalorder %s23, 0
        %s218 = scalar_select %p217, %s23, 0
        %s219 = scalar_lea.vmem %s2, %s218
        %p220 = pneg %p113
        %p221 = pneg %p110
        %p222 = pneg %p141
        %p223 = pneg %p138
        %s224 = sand.u32 %s128, 1
        %s225 = scalar_lea.sflag [#allocation3], %s224
        %s226 = sand.u32 %s128, 1
        %s227 = smul.addr %s226, 32
        %s228 = scalar_lea.vmem [#allocation2], %s227
        %s229 = smul.u32 4, %s22
        %p230 = scmp.lt.s32.totalorder %s229, 7
        %s231 = scalar_select %p230, %s229, 7
        %p232 = scmp.lt.s32.totalorder %s24, 0
        %s233 = scalar_select %p232, %s24, 0
        %s234 = sadd.s32 %s233, %s231
        %s235 = smul.addr %s234, 8
        %s236 = scalar_lea.vmem %s0, %s235
        %s237 = smul.u32 4, %s22
        %s238 = smul.u32 4, %s24
        %p239 = scmp.lt.s32.totalorder %s238, 3
        %s240 = scalar_select %p239, %s238, 3
        %p241 = scmp.lt.s32.totalorder %s23, 0
        %s242 = scalar_select %p241, %s23, 0
        %s243 = sadd.s32 %s242, %s240
        %s244 = smul.addr %s243, 4
        %s245 = scalar_lea.vmem %s1, %s244
        %s246 = smul.u32 4, %s24
        %p247 = scmp.lt.s32.totalorder %s23, 0
        %s248 = scalar_select %p247, %s23, 0
        %s249 = scalar_lea.vmem %s2, %s248
        %s250 = smul.u32 4, %s22
        %v252 = vld [vmem:[%s236] sm:$0xff]
        %v253 = vld [vmem:[%s236 + $0x8] sm:$0xff]
        %v254 = vld [vmem:[%s236 + $0x10] sm:$0xff]
        %v255 = vld [vmem:[%s236 + $0x18] sm:$0xff]
        %v256 = vpack.c.bf16 %v253, %v252
        %v257 = vpack.c.bf16 %v255, %v254
        %v258 = vld [vmem:[%s245] sm:$0xf]
        %v259 = vld [vmem:[%s245 + $0x4] sm:$0xf]
        %v260 = vld [vmem:[%s245 + $0x8] sm:$0xf]
        %v261 = vld [vmem:[%s245 + $0xc] sm:$0xf]
        %v266 = vunpack.c.l.b16 %v258
        %v267 = vunpack.c.l.b16 %v259
        %v268 = vunpack.c.l.b16 %v260
        %v269 = vunpack.c.l.b16 %v261
        %v270 = vpack.c.b16 %v267, %v266
        %v271 = vpack.c.b16 %v269, %v268
        %vm274 = vcmask 261120
        %v276 = vsel %vm274, %v256, 0
        %v279 = vsel %vm274, %v257, 0
        %281 = vmatprep.subr.bf16.mxu0 0
        %282 = vmatpush1.bf16.msra.mxu0 %v270
        %283 = vmatprep.subr.bf16.mxu0 0
        %284 = vmatpush1.bf16.msra.mxu0 %v271
        %285 = vmatprep.subr.bf16.mxu0 0
        %286 = vmatpush1.bf16.msra.mxu0 0
        %287 = vmatprep.subr.bf16.mxu0 0
        %288 = vmatpush1.bf16.msra.mxu0 0
        %289 = vmatprep.subr.bf16.mxu0 0
        %290 = vmatpush1.bf16.msra.mxu0 0
        %291 = vmatprep.subr.bf16.mxu0 0
        %292 = vmatpush1.bf16.msra.mxu0 0
        %293 = vmatprep.subr.bf16.mxu0 0
        %294 = vmatpush1.bf16.msra.mxu0 0
        %295 = vmatprep.subr.bf16.mxu0 0
        %296 = vmatpush1.bf16.msra.mxu0 0
        %297 = vmatprep.subr.bf16.mxu0 0
        %298 = vmatpush1.bf16.msra.mxu0 0
        %299 = vmatprep.subr.bf16.mxu0 0
        %300 = vmatpush1.bf16.msra.mxu0 0
        %301 = vmatprep.subr.bf16.mxu0 0
        %302 = vmatpush1.bf16.msra.mxu0 0
        %303 = vmatprep.subr.bf16.mxu0 0
        %304 = vmatpush1.bf16.msra.mxu0 0
        %305 = vmatprep.subr.bf16.mxu0 0
        %306 = vmatpush1.bf16.msra.mxu0 0
        %307 = vmatprep.subr.bf16.mxu0 0
        %308 = vmatpush1.bf16.msra.mxu0 0
        %309 = vmatprep.subr.bf16.mxu0 0
        %310 = vmatpush1.bf16.msra.mxu0 0
        %311 = vmatprep.subr.bf16.mxu0 0
        %312 = vmatpush1.bf16.msra.mxu0 0
        %313 = vmatprep.mubr.bf16.mxu0 0
        %314 = vmatmul.mubr.bf16.gmra.mrb[0].mxu0 %v276
        %v315 = vpop.f32.mrb[0].mxu0
        %v316 = vadd.f32 0.0, %v315
        %v317 = vpop.f32.mrb[0].mxu0
        %v318 = vpop.f32.mrb[0].mxu0
        %v319 = vadd.f32 0.0, %v318
        %v320 = vpop.f32.mrb[0].mxu0
        %321 = vmatprep.mubr.bf16.mxu0 0
        %322 = vmatmul.mubr.bf16.gmra.mrb[0].mxu0 %v279
        %v323 = vpop.f32.mrb[0].mxu0
        %v324 = vadd.f32 0.0, %v323
        %v325 = vpop.f32.mrb[0].mxu0
        %v326 = vpop.f32.mrb[0].mxu0
        %v327 = vadd.f32 0.0, %v326
        %v328 = vpop.f32.mrb[0].mxu0
        %329 = vdwg.mxu0
        %p330 = scmp.eq.s32.totalorder %s24, 0
        // Predicated region
        $region33: #{tpu_custom_call.1} parent=31 // pred_check
          %p331 = pneg %p330
        $region34: #{tpu_custom_call.1} parent=31 // pred_check_branch
          %333 = sbr.rel (%p331) target = $region36
        $region35: #{tpu_custom_call.1} parent=31 // pred_region
          %v334 = vld [vmem:[%s249] sm:$0x1]
          %v336 = vlaneseq
          %v337 = vshrl.u32 %v336, 7
          %v338 = vsub.s32 0, %v337
          %v339 = vrot.slane %v334, %v338
          %v341 = vsub.f32 %v316, %v339
          %v342 = vsub.f32 %v319, %v339
          %v343 = vsub.f32 %v324, %v339
          %v344 = vsub.f32 %v327, %v339
          %345 = vst [vmem:[%s228] sm:$0xff] %v341
          %346 = vst [vmem:[%s228 + $0x8] sm:$0xff] %v342
          %347 = vst [vmem:[%s228 + $0x10] sm:$0xff] %v343
          %348 = vst [vmem:[%s228 + $0x18] sm:$0xff] %v344
        $region36: #{tpu_custom_call.1} parent=31 // pred_fallthru
          _
        %p349 = scmp.gt.s32.totalorder %s24, 0
        // Predicated region
        $region37: #{tpu_custom_call.1} parent=31 // pred_check
          %p350 = pneg %p349
        $region38: #{tpu_custom_call.1} parent=31 // pred_check_branch
          %352 = sbr.rel (%p350) target = $region40
        $region39: #{tpu_custom_call.1} parent=31 // pred_region
          %v353 = vld [vmem:[%s228] sm:$0xff]
          %v354 = vld [vmem:[%s228 + $0x8] sm:$0xff]
          %v355 = vld [vmem:[%s228 + $0x10] sm:$0xff]
          %v356 = vld [vmem:[%s228 + $0x18] sm:$0xff]
          %v357 = vadd.f32 %v353, %v316
          %v358 = vadd.f32 %v354, %v319
          %v359 = vadd.f32 %v355, %v324
          %v360 = vadd.f32 %v356, %v327
          %361 = vst [vmem:[%s228] sm:$0xff] %v357
          %362 = vst [vmem:[%s228 + $0x8] sm:$0xff] %v358
          %363 = vst [vmem:[%s228 + $0x10] sm:$0xff] %v359
          %364 = vst [vmem:[%s228 + $0x18] sm:$0xff] %v360
        $region40: #{tpu_custom_call.1} parent=31 // pred_fallthru
          _
        %s365 = sand.u32 %s128, 1
        %s366 = scalar_lea.sflag [#allocation3], %s365
        %s367 = sand.u32 %s128, 1
        %s368 = smul.addr %s367, 32
        %s369 = scalar_lea.vmem [#allocation2], %s368
        // Predicated region
        $region41: #{tpu_custom_call.1} parent=31 // pred_check
          %p370 = pneg %p138
        $region42: #{tpu_custom_call.1} parent=31 // pred_check_branch
          %372 = sbr.rel (%p370) target = $region44
        $region43: #{tpu_custom_call.1} parent=31 // pred_region
          %s373 = smul.u32 4, %s22
          %s375 = ssub.s32 512, 512
          %376 = vsyncadd %s366, %s375
          %s377 = sadd.s32 %s23, %s373
          %s378 = smul.addr %s377, 128
          %s379 = scalar_lea.hbm %s3, %s378
          %s380 = sshll.u32 %s369, 4
          %s381 = int_to_ptr.vmem [resolvable:$true] %s380
          %386 = dma.vmem_to_hbm [thread:$0]  %s381, 512, %s379, %s366, 128, 128, 8
        $region44: #{tpu_custom_call.1} parent=31 // pred_fallthru
          _
      $region32: #{tpu_custom_call.1} parent=5 // pred_fallthru
        _
      %p387 = scmp.le.s32.totalorder 2, %s12
      // Predicated region
      $region45: #{tpu_custom_call.1} parent=5 // pred_check
        %p388 = pneg %p387
      $region46: #{tpu_custom_call.1} parent=5 // pred_check_branch
        %390 = sbr.rel (%p388) target = $region48
      $region47: #{tpu_custom_call.1} parent=5 // pred_region
        %s391 = ssub.s32 %s12, 2
        // Predicated region
        $region49: #{tpu_custom_call.1} parent=47 // pred_check
          %p392 = pneg %p144
        $region50: #{tpu_custom_call.1} parent=47 // pred_check_branch
          %394 = sbr.rel (%p392) target = $region52
        $region51: #{tpu_custom_call.1} parent=47 // pred_region
          %s395 = sand.u32 %s129, 1
          %s396 = scalar_lea.sflag [#allocation3], %s395
          %s397 = sand.u32 %s129, 1
          %s398 = smul.addr %s397, 32
          %s399 = scalar_lea.vmem [#allocation2], %s398
          %400 = dma.done %s396, 512
        $region52: #{tpu_custom_call.1} parent=47 // pred_fallthru
          _
      $region48: #{tpu_custom_call.1} parent=5 // pred_fallthru
        _
    $region6: #{tpu_custom_call.1} parent=1 // loop_footer
      %s16 = sadd.s32 1, %s12
    $region7: #{tpu_custom_call.1} parent=1 // loop_footer_branch
      %11 = sbr.rel target = $region3
    $region8: #{tpu_custom_call.1} parent=1 // loop_exit
      _
    %401 = vsyncpa [#allocation3], 1
    %s402 = scalar_lea.sflag [#allocation3], 1
    %403 = vsyncpa %s402, 1

</llo_original>
